<compile_context>
chip_gen: v7x
topology: tpu7x:2x2x1
jax: 0.10.0
libtpu: 0.0.40
codegen_flags: <defaults>
</compile_context>

<pallas_src>
import functools
import math

import jax
import jax.numpy as jnp
from jax.experimental import pallas as pl
from jax.experimental.pallas import tpu as pltpu

_INV_SQRT2 = 0.7071067811865476
_MIB = 1024 * 1024

# Per-generation defaults: row tile and scoped-VMEM ceiling.
_DEFAULT_TM = {5: 512, 6: 1024, 7: 512}
_VMEM_CAP = {5: 100 * _MIB, 6: 100 * _MIB, 7: 60 * _MIB}


def _round_up(a: int, b: int) -> int:
    return (a + b - 1) // b * b


def _tpu_generation() -> int:
    try:
        kind = jax.devices()[0].device_kind.lower()
    except Exception:
        return 0
    if "v7" in kind or "7x" in kind:
        return 7
    for g in (6, 5, 4):
        if f"v{g}" in kind:
            return g
    return 0


def _gelu_exact(x):
    # F.gelu default: exact (erf) formulation, computed in f32.
    return 0.5 * x * (1.0 + jax.lax.erf(x * jnp.float32(_INV_SQRT2)))


# ---------------------------------------------------------------------------
# Kernels. Grid: (M // tm [parallel], I // ti [arbitrary reduction]).
#   x_ref   : (tm, H)      input row tile            (constant along k)
#   wgu_ref : (H, 2*ti)    fused gate|up weight chunk (pre-transposed)
#   wr_ref  : (ti, H)      resid-proj weight chunk    (pre-transposed)
#   o_ref   : (tm, H)      output row tile            (constant along k)
# ---------------------------------------------------------------------------
def _mlp_kernel_scratch(x_ref, wgu_ref, wr_ref, o_ref, acc_ref):
    k = pl.program_id(1)

    @pl.when(k == 0)
    def _():
        acc_ref[...] = jnp.zeros_like(acc_ref)

    ti = wr_ref.shape[0]
    gu = jnp.dot(x_ref[...], wgu_ref[...], preferred_element_type=jnp.float32)
    gate = gu[:, :ti]
    up = gu[:, ti:]
    h = (_gelu_exact(gate) * up).astype(wr_ref.dtype)
    acc_ref[...] += jnp.dot(h, wr_ref[...], preferred_element_type=jnp.float32)

    @pl.when(k == pl.num_programs(1) - 1)
    def _():
        o_ref[...] = acc_ref[...].astype(o_ref.dtype)


def _mlp_kernel_f32out(x_ref, wgu_ref, wr_ref, o_ref):
    # f32 output: accumulate directly into the resident output tile
    # (saves a tm*H*4-byte scratch buffer).
    k = pl.program_id(1)

    @pl.when(k == 0)
    def _():
        o_ref[...] = jnp.zeros_like(o_ref)

    ti = wr_ref.shape[0]
    gu = jnp.dot(x_ref[...], wgu_ref[...], preferred_element_type=jnp.float32)
    gate = gu[:, :ti]
    up = gu[:, ti:]
    h = (_gelu_exact(gate) * up).astype(wr_ref.dtype)
    o_ref[...] += jnp.dot(h, wr_ref[...], preferred_element_type=jnp.float32)


# ---------------------------------------------------------------------------
# One-time weight prep (hoisted off the per-call path): split gate/up,
# transpose to matmul layout, cast to the compute dtype, pad I once, fuse
# gate|up into one contiguous (I/ti, H, 2*ti) slab, pre-block resid as
# (I/ti, ti, H) so each grid step's DMA is a contiguous chunk.
# ---------------------------------------------------------------------------
def prepare_weights(w_gate_up, w_resid, compute_dtype=None, ti=512):
    two_i, hidden = w_gate_up.shape
    inter = two_i // 2
    dt = jnp.dtype(compute_dtype) if compute_dtype is not None else jnp.dtype(
        w_gate_up.dtype)

    ti_eff = max(128, min(_round_up(int(ti), 128), _round_up(inter, 128)))
    i_pad = _round_up(inter, ti_eff)
    n_blk = i_pad // ti_eff

    wg = w_gate_up[:inter]            # (I, H)
    wu = w_gate_up[inter:]            # (I, H)
    wr = w_resid                      # (H, I)
    if i_pad != inter:
        pad = i_pad - inter
        wg = jnp.pad(wg, ((0, pad), (0, 0)))
        wu = jnp.pad(wu, ((0, pad), (0, 0)))
        wr = jnp.pad(wr, ((0, 0), (0, pad)))

    # (H, i_pad) -> (n_blk, H, ti); fuse gate|up along the lane dim.
    wg_b = wg.T.reshape(hidden, n_blk, ti_eff).transpose(1, 0, 2)
    wu_b = wu.T.reshape(hidden, n_blk, ti_eff).transpose(1, 0, 2)
    w_gu = jnp.concatenate([wg_b, wu_b], axis=-1).astype(dt)   # (n_blk, H, 2*ti)
    w_r = wr.T.reshape(n_blk, ti_eff, hidden).astype(dt)       # (n_blk, ti, H)
    return w_gu, w_r


@functools.partial(
    jax.jit,
    static_argnames=("tm", "out_dtype", "vmem_cap", "two_core_split"))
def _mlp_pallas_jit(x, w_gu, w_r, *, tm, out_dtype, vmem_cap, two_core_split):
    B, T, H = x.shape
    M = B * T
    n_blk, _, two_ti = w_gu.shape
    ti = two_ti // 2
    out_dt = jnp.dtype(out_dtype)
    compute_dtype = w_gu.dtype
    in_bytes = jnp.dtype(compute_dtype).itemsize
    out_bytes = out_dt.itemsize
    use_scratch = out_dt != jnp.dtype(jnp.float32)

    # bf16 packs 16 rows per sublane tile; keep the row tile a multiple of it.
    gran = 16 if in_bytes < 4 else 8
    tm_eff = min(_round_up(int(tm), gran), _round_up(M, gran))

    # v7x: make sure the parallel row axis has >= 2 tiles so both TensorCores
    # get work.
    if two_core_split and M > gran and _round_up(M, tm_eff) // tm_eff < 2:
        tm_eff = _round_up(-(-M // 2), gran)

    def vmem_needed(tm_):
        return (
            2 * tm_ * H * in_bytes              # x tile (double-buffered)
            + 2 * H * 2 * ti * in_bytes         # fused gate|up weight chunk
            + 2 * ti * H * in_bytes             # resid weight chunk
            + 2 * tm_ * H * out_bytes           # output tile
            + (tm_ * H * 4 if use_scratch else 0)  # f32 accumulator scratch
            # compiler temporaries within one step:
            + tm_ * 2 * ti * 4                  # gu (f32)
            + tm_ * ti * 4                      # gelu(gate) * up (f32)
            + tm_ * ti * in_bytes               # h cast
            + tm_ * H * 4                       # second-dot result before +=
        )

    # Auto-shrink the row tile if the footprint exceeds the scoped-VMEM cap.
    while tm_eff > gran and vmem_needed(tm_eff) > vmem_cap:
        tm_eff = max(gran, _round_up(tm_eff // 2, gran))

    m_pad = _round_up(M, tm_eff)
    x2d = x.reshape(M, H).astype(compute_dtype)
    if m_pad != M:
        x2d = jnp.pad(x2d, ((0, m_pad - M), (0, 0)))

    grid = (m_pad // tm_eff, n_blk)
    vmem_limit = min(max(int(vmem_needed(tm_eff) * 1.25), 32 * _MIB),
                     max(int(vmem_cap), 32 * _MIB))

    i_pad = n_blk * ti
    cost = pl.CostEstimate(
        flops=6 * m_pad * H * i_pad,        # 2*M*H*2I + 2*M*I*H
        transcendentals=m_pad * i_pad,      # one erf per gate element
        bytes_accessed=(x2d.size * in_bytes
                        + (w_gu.size + w_r.size) * in_bytes
                        + m_pad * H * out_bytes),
    )

    kernel = _mlp_kernel_scratch if use_scratch else _mlp_kernel_f32out
    scratch = [pltpu.VMEM((tm_eff, H), jnp.float32)] if use_scratch else []

    out = pl.pallas_call(
        kernel,
        out_shape=jax.ShapeDtypeStruct((m_pad, H), out_dt),
        grid_spec=pltpu.PrefetchScalarGridSpec(
            num_scalar_prefetch=0,
            grid=grid,
            in_specs=[
                pl.BlockSpec((tm_eff, H), lambda i, k: (i, 0)),
                pl.BlockSpec((None, H, 2 * ti), lambda i, k: (k, 0, 0)),
                pl.BlockSpec((None, ti, H), lambda i, k: (k, 0, 0)),
            ],
            out_specs=pl.BlockSpec((tm_eff, H), lambda i, k: (i, 0)),
            scratch_shapes=scratch,
        ),
        compiler_params=pltpu.CompilerParams(
            dimension_semantics=("parallel", "arbitrary"),
            vmem_limit_bytes=vmem_limit,
        ),
        cost_estimate=cost,
    )(x2d, w_gu, w_r)

    if m_pad != M:
        out = out[:M]
    return out.reshape(B, T, H)


def mlp_pallas(x, w_gu_blocked, w_r_blocked, *, tm=None, out_dtype=None):
    """Hawk MLP forward. x: (B, T, H); weights from prepare_weights()."""
    gen = _tpu_generation()
    if tm is None:
        tm = _DEFAULT_TM.get(gen, 512)
    vmem_cap = _VMEM_CAP.get(gen, 64 * _MIB)
    out_dt = jnp.dtype(out_dtype) if out_dtype is not None else jnp.dtype(x.dtype)
    return _mlp_pallas_jit(
        x, w_gu_blocked, w_r_blocked,
        tm=int(tm), out_dtype=out_dt.name, vmem_cap=int(vmem_cap),
        two_core_split=(gen == 7))


# ---------------------------------------------------------------------------
# Params / reference
# ---------------------------------------------------------------------------
def init_params(key, hidden_size, intermediate_size, dtype=jnp.float32):
    # Matches MLP.reset_parameters():
    #   gate_up_proj.weight ~ N(0, 1/sqrt(hidden_size)), shape (2*I, H)
    #   resid_proj.weight   = zeros,                      shape (H, I)
    w_gate_up = jax.random.normal(
        key, (2 * intermediate_size, hidden_size), dtype=dtype
    ) * (1.0 / math.sqrt(hidden_size))
    w_resid = jnp.zeros((hidden_size, intermediate_size), dtype=dtype)
    return w_gate_up, w_resid


def mlp_reference(x, w_gate_up, w_resid, compute_dtype=None):
    """Pure-JAX reference mirroring the kernel numerics: operands cast to the
    compute dtype, matmuls accumulated in f32, gelu in f32."""
    cd = compute_dtype if compute_dtype is not None else x.dtype
    inter = w_gate_up.shape[0] // 2
    hp = jax.lax.Precision.HIGHEST
    xf = x.astype(cd).astype(jnp.float32)
    wg = w_gate_up[:inter].astype(cd).astype(jnp.float32)
    wu = w_gate_up[inter:].astype(cd).astype(jnp.float32)
    wr = w_resid.astype(cd).astype(jnp.float32)
    gate = jnp.einsum("bth,ih->bti", xf, wg, precision=hp)
    up = jnp.einsum("bth,ih->bti", xf, wu, precision=hp)
    h = (_gelu_exact(gate) * up).astype(cd).astype(jnp.float32)
    y = jnp.einsum("bti,hi->bth", h, wr, precision=hp)
    return y.astype(x.dtype)


if __name__ == "__main__":
    B, T, H, I = 2, 16, 256, 512   # batch, seq, hidden_size, intermediate_size
    compute_dtype = jnp.bfloat16   # bf16 MXU operands, f32 accumulation

    key = jax.random.PRNGKey(0)
    k_x, k_w, k_r = jax.random.split(key, 3)
    x = jax.random.normal(k_x, (B, T, H), dtype=jnp.float32)
    w_gate_up, w_resid_zero = init_params(k_w, H, I)

    # 1) Module default: zero-initialized resid_proj -> exact zeros.
    w_gu, w_r = prepare_weights(w_gate_up, w_resid_zero, compute_dtype, ti=128)
    y0 = jax.block_until_ready(mlp_pallas(x, w_gu, w_r))
    assert y0.shape == (B, T, H)
    assert bool(jnp.all(y0 == 0.0))

    # Non-vacuous numerical check: random (non-zero) resid weight.
    w_resid = jax.random.normal(k_r, (H, I), dtype=jnp.float32) * (
        1.0 / math.sqrt(I)
    )
    y_ref = mlp_reference(x, w_gate_up, w_resid, compute_dtype)

    # 2) Small tiles: exercises both the row-tile axis and the I-reduction /
    #    accumulator axis (4 k-steps).
    w_gu_s, w_r_s = prepare_weights(w_gate_up, w_resid, compute_dtype, ti=128)
    y_small = jax.block_until_ready(mlp_pallas(x, w_gu_s, w_r_s, tm=16))
    assert y_small.shape == (B, T, H)
    err_s = float(jnp.max(jnp.abs(y_small - y_ref)))
    assert jnp.allclose(y_small, y_ref, atol=1e-3, rtol=1e-2), f"max err {err_s}"

    # 3) Production-style defaults (auto tm, ti=512, f32 output accumulating
    #    directly into the resident output tile).
    w_gu_p, w_r_p = prepare_weights(w_gate_up, w_resid, compute_dtype)
    y_big = jax.block_until_ready(mlp_pallas(x, w_gu_p, w_r_p))
    err_b = float(jnp.max(jnp.abs(y_big - y_ref)))
    assert jnp.allclose(y_big, y_ref, atol=1e-3, rtol=1e-2), f"max err {err_b}"

    # 4) bf16 output (f32 scratch-accumulator path, halved output VMEM/HBM).
    y_bf16 = jax.block_until_ready(
        mlp_pallas(x, w_gu_p, w_r_p, out_dtype=jnp.bfloat16))
    assert y_bf16.dtype == jnp.bfloat16
    assert jnp.allclose(y_bf16.astype(jnp.float32), y_ref, atol=5e-2, rtol=5e-2)

    print("KERNEL_OK")
</pallas_src>

<mosaic_0001>
module attributes {stable_mosaic.version = 11 : i64} {
  func.func @_mlp_kernel_f32out(%arg0: i32, %arg1: i32, %arg2: memref<32x256xbf16, #tpu.memory_space<vmem>>, %arg3: memref<1x256x256xbf16, #tpu.memory_space<vmem>>, %arg4: memref<1x128x256xbf16, #tpu.memory_space<vmem>>, %arg5: memref<32x256xf32, #tpu.memory_space<vmem>>) attributes {dimension_semantics = [#tpu.dimension_semantics<parallel>, #tpu.dimension_semantics<arbitrary>], iteration_bounds = array<i64: 1, 4>, scalar_prefetch = 0 : i64, scratch_operands = 0 : i64, tpu.core_type = #tpu.core_type<tc>, window_params = [{transform_indices = @transform_0, window_bounds = array<i64: 32, 256>}, {transform_indices = @transform_1, window_bounds = array<i64: 1, 256, 256>}, {transform_indices = @transform_2, window_bounds = array<i64: 1, 128, 256>}, {transform_indices = @transform_3, window_bounds = array<i64: 32, 256>}]} {
    %c0_i32 = arith.constant 0 : i32
    %0 = arith.cmpi eq, %arg1, %c0_i32 : i32
    %1 = arith.extui %0 : i1 to i32
    %c0_i32_0 = arith.constant 0 : i32
    %2 = arith.cmpi ne, %1, %c0_i32_0 : i32
    scf.if %2 {
      %cst_16 = arith.constant 0.000000e+00 : f32
      %25 = vector.broadcast %cst_16 : f32 to vector<32x256xf32>
      %c0_17 = arith.constant 0 : index
      %c0_18 = arith.constant 0 : index
      %26 = vector.load %arg5[%c0_17, %c0_18] : memref<32x256xf32, #tpu.memory_space<vmem>>, vector<32x256xf32>
      tpu.vector_store %arg5[%c0_17, %c0_18], %25 {strides = array<i32>} : memref<32x256xf32, #tpu.memory_space<vmem>>, vector<32x256xf32>,
    } else {
    }
    %c0 = arith.constant 0 : index
    %c0_1 = arith.constant 0 : index
    %3 = vector.load %arg2[%c0, %c0_1] : memref<32x256xbf16, #tpu.memory_space<vmem>>, vector<32x256xbf16>
    %c0_2 = arith.constant 0 : index
    %c0_3 = arith.constant 0 : index
    %c0_4 = arith.constant 0 : index
    %4 = vector.load %arg3[%c0_2, %c0_3, %c0_4] : memref<1x256x256xbf16, #tpu.memory_space<vmem>>, vector<1x256x256xbf16>
    %5 = vector.shape_cast %4 : vector<1x256x256xbf16> to vector<256x256xbf16>
    %cst = arith.constant dense<0.000000e+00> : vector<32x256xf32>
    %6 = tpu.matmul %3, %5, %cst {dimension_numbers = #tpu.dot_dimension_numbers<[1], [0], [0], [1], [0, 0, 1, 1], [], []>} : vector<32x256xbf16>, vector<256x256xbf16>, vector<32x256xf32> -> vector<32x256xf32>
    %7 = vector.extract_strided_slice %6 {offsets = [0, 0], sizes = [32, 128], strides = [1, 1]} : vector<32x256xf32> to vector<32x128xf32>
    %8 = vector.extract_strided_slice %6 {offsets = [0, 128], sizes = [32, 128], strides = [1, 1]} : vector<32x256xf32> to vector<32x128xf32>
    %cst_5 = arith.constant 5.000000e-01 : f32
    %9 = vector.broadcast %cst_5 : f32 to vector<32x128xf32>
    %10 = arith.mulf %9, %7 : vector<32x128xf32>
    %cst_6 = arith.constant 0.707106769 : f32
    %11 = vector.broadcast %cst_6 : f32 to vector<32x128xf32>
    %12 = arith.mulf %7, %11 : vector<32x128xf32>
    %13 = math.erf %12 : vector<32x128xf32>
    %cst_7 = arith.constant 1.000000e+00 : f32
    %14 = vector.broadcast %cst_7 : f32 to vector<32x128xf32>
    %15 = arith.addf %14, %13 : vector<32x128xf32>
    %16 = arith.mulf %10, %15 : vector<32x128xf32>
    %17 = arith.mulf %16, %8 : vector<32x128xf32>
    %18 = arith.truncf %17 : vector<32x128xf32> to vector<32x128xbf16>
    %c0_8 = arith.constant 0 : index
    %c0_9 = arith.constant 0 : index
    %19 = vector.load %arg5[%c0_8, %c0_9] : memref<32x256xf32, #tpu.memory_space<vmem>>, vector<32x256xf32>
    %c0_10 = arith.constant 0 : index
    %c0_11 = arith.constant 0 : index
    %c0_12 = arith.constant 0 : index
    %20 = vector.load %arg4[%c0_10, %c0_11, %c0_12] : memref<1x128x256xbf16, #tpu.memory_space<vmem>>, vector<1x128x256xbf16>
    %21 = vector.shape_cast %20 : vector<1x128x256xbf16> to vector<128x256xbf16>
    %cst_13 = arith.constant dense<0.000000e+00> : vector<32x256xf32>
    %22 = tpu.matmul %18, %21, %cst_13 {dimension_numbers = #tpu.dot_dimension_numbers<[1], [0], [0], [1], [0, 0, 1, 1], [], []>} : vector<32x128xbf16>, vector<128x256xbf16>, vector<32x256xf32> -> vector<32x256xf32>
    %23 = arith.addf %19, %22 : vector<32x256xf32>
    %c0_14 = arith.constant 0 : index
    %c0_15 = arith.constant 0 : index
    %24 = vector.load %arg5[%c0_14, %c0_15] : memref<32x256xf32, #tpu.memory_space<vmem>>, vector<32x256xf32>
    tpu.vector_store %arg5[%c0_14, %c0_15], %23 {strides = array<i32>} : memref<32x256xf32, #tpu.memory_space<vmem>>, vector<32x256xf32>,
    return
  }
  func.func @transform_0(%arg0: i32, %arg1: i32) -> (i32, i32) {
    %c0_i32 = arith.constant 0 : i32
    %c0_i32_0 = arith.constant 0 : i32
    return %arg0, %c0_i32 : i32, i32
  }
  func.func @transform_1(%arg0: i32, %arg1: i32) -> (i32, i32, i32) {
    %c0_i32 = arith.constant 0 : i32
    %c0_i32_0 = arith.constant 0 : i32
    %c0_i32_1 = arith.constant 0 : i32
    return %arg1, %c0_i32, %c0_i32_0 : i32, i32, i32
  }
  func.func @transform_2(%arg0: i32, %arg1: i32) -> (i32, i32, i32) {
    %c0_i32 = arith.constant 0 : i32
    %c0_i32_0 = arith.constant 0 : i32
    %c0_i32_1 = arith.constant 0 : i32
    return %arg1, %c0_i32, %c0_i32_0 : i32, i32, i32
  }
  func.func @transform_3(%arg0: i32, %arg1: i32) -> (i32, i32) {
    %c0_i32 = arith.constant 0 : i32
    %c0_i32_0 = arith.constant 0 : i32
    return %arg0, %c0_i32 : i32, i32
  }
}

</mosaic_0001>

<llo_original>
// kernel: _mlp_pallas_jit.1
$region0: #{_mlp_pallas_jit.1}
  #allocation0 [shape = 'u32[]', space=smem, size = 0x4, offset = 0x4, fixed_abs, tag = 'smem constant byte address 0x4 - core index']
  #allocation1 [shape = 'u32[144,128]{1,0:T(1,128)}', space=vmem, size = 0x12000, scoped, tag = 'internal scratch']
  %s0 = inlined_call_operand.vmem [shape: bf16[32,256], index: 0, kind: input, shape index: {}]
  %s1 = inlined_call_operand.hbm [shape: bf16[4,256,256], index: 1, kind: input, shape index: {}]
  %s2 = inlined_call_operand.hbm [shape: bf16[4,128,256], index: 2, kind: input, shape index: {}]
  %s3 = inlined_call_operand.hbm [shape: f32[32,256], index: 3, kind: output, shape index: {}]
  %s4 = sld [smem:[#allocation0]]
  $region57: #{_mlp_pallas_jit.1} parent=0
    _
  %s6 = ssub.s32 1, %s4
  %s7 = scalar_select 0, %s6, %s4
  $region1: #{_mlp_pallas_jit.1} parent=0
    #allocation2 [shape = 'u8[262144]{0}', space=vmem, size = 0x40000, scoped, tag = 'input window, operand 1']
    #allocation3 [shape = 's32[2]{0}', space=sflag, size = 0x8, scoped, tag = 'scoped memory for _mlp_pallas_jit.1']
    #allocation4 [shape = 's32[2]{0}', space=sflag, size = 0x8, scoped, tag = 'scoped memory for _mlp_pallas_jit.1']
    #allocation5 [shape = 'u8[131072]{0}', space=vmem, size = 0x20000, scoped, tag = 'input window, operand 2']
    #allocation6 [shape = 's32[2]{0}', space=sflag, size = 0x8, scoped, tag = 'scoped memory for _mlp_pallas_jit.1']
    #allocation7 [shape = 'u8[32768]{0}', space=vmem, size = 0x8000, scoped, tag = 'output window, operand 0, single buffered']
    %8 = vsyncpa [#allocation3], 0
    %s9 = scalar_lea.sflag [#allocation3], 1
    %10 = vsyncpa %s9, 0
    %11 = vsyncpa [#allocation6], 0
    %s12 = scalar_lea.sflag [#allocation6], 1
    %13 = vsyncpa %s12, 0
    %14 = vsyncpa [#allocation4], 0
    loop: start=0, step=1, limit=6
    $region2: #{_mlp_pallas_jit.1} parent=1 // loop_pre_header
      _
    $region3: #{_mlp_pallas_jit.1} parent=1 // loop_header
      %s16 = sphi 0, %s20
      %p17 = scmp.ge.s32.totalorder %s16, 6
      %s23 = sphi 0, %s35
      %s24 = sphi 0, %s31
      %s25 = sphi 0, %s23
      %s26 = sphi 0, %s24
      %s27 = sphi 0, %s25
      %s28 = sphi 0, %s26
      %s38 = sphi 0, %s40
      %s41 = sphi 0, %s38
      %s42 = sphi 0, %s41
      %s58 = sphi 0, %s42
      %s64 = sphi 0, %s66
      %s67 = sphi 0, %s64
      %s68 = sphi 0, %s67
      %s84 = sphi 0, %s68
      %s90 = sphi 0, %s92
      %s93 = sphi 0, %s90
      %s94 = sphi 0, %s93
      %s110 = sphi 0, %s94
      %s116 = sphi 0, %s118
      %s119 = sphi 0, %s116
      %s120 = sphi 0, %s119
      %s136 = sphi 0, %s120
    $region4: #{_mlp_pallas_jit.1} parent=1 // loop_header_branch
      %19 = sbr.rel (%p17) target = $region8
    $region5: #{_mlp_pallas_jit.1} parent=1 // loop_body
      %s21 = ssub.s32 %s16, 1
      %s22 = ssub.s32 %s16, 2
      %s29 = sadd.s32 1, %s24
      %p30 = scmp.ge.s32.totalorder %s29, 4
      %s31 = scalar_select %p30, 0, %s29
      %s32 = sadd.s32 1, %s23
      %s33 = scalar_select %p30, %s32, %s23
      %p34 = scmp.ge.s32.totalorder %s33, 1
      %s35 = scalar_select %p34, 0, %s33
      %s36 = ssub.s32 %s23, %s35
      %p37 = scmp.eq.s32.totalorder %s36, 0
      %s39 = sadd.s32 %s38, 1
      %s40 = scalar_select %p37, %s38, %s39
      %p43 = pneg %p37
      %p44 = scmp.eq.s32.totalorder %s16, 3
      %p45 = por %p43, %p44
      %p46 = scmp.ne.s32.totalorder %s38, %s41
      %p47 = scmp.eq.s32.totalorder %s16, 0
      %p48 = por %p46, %p47
      %p49 = scmp.ne.s32.totalorder %s38, %s41
      %p50 = scmp.eq.s32.totalorder %s21, 3
      %p51 = por %p49, %p50
      %p52 = scmp.ne.s32.totalorder %s41, %s42
      %p53 = scmp.eq.s32.totalorder %s21, 0
      %p54 = por %p52, %p53
      %p55 = scmp.ne.s32.totalorder %s41, %s42
      %p56 = scmp.eq.s32.totalorder %s22, 3
      %p57 = por %p55, %p56
      %p59 = scmp.ne.s32.totalorder %s42, %s58
      %p60 = scmp.eq.s32.totalorder %s22, 0
      %p61 = por %p59, %p60
      %s62 = ssub.s32 %s24, %s31
      %p63 = scmp.eq.s32.totalorder %s62, 0
      %s65 = sadd.s32 %s64, 1
      %s66 = scalar_select %p63, %s64, %s65
      %p69 = pneg %p63
      %p70 = scmp.eq.s32.totalorder %s16, 3
      %p71 = por %p69, %p70
      %p72 = scmp.ne.s32.totalorder %s64, %s67
      %p73 = scmp.eq.s32.totalorder %s16, 0
      %p74 = por %p72, %p73
      %p75 = scmp.ne.s32.totalorder %s64, %s67
      %p76 = scmp.eq.s32.totalorder %s21, 3
      %p77 = por %p75, %p76
      %p78 = scmp.ne.s32.totalorder %s67, %s68
      %p79 = scmp.eq.s32.totalorder %s21, 0
      %p80 = por %p78, %p79
      %p81 = scmp.ne.s32.totalorder %s67, %s68
      %p82 = scmp.eq.s32.totalorder %s22, 3
      %p83 = por %p81, %p82
      %p85 = scmp.ne.s32.totalorder %s68, %s84
      %p86 = scmp.eq.s32.totalorder %s22, 0
      %p87 = por %p85, %p86
      %s88 = ssub.s32 %s24, %s31
      %p89 = scmp.eq.s32.totalorder %s88, 0
      %s91 = sadd.s32 %s90, 1
      %s92 = scalar_select %p89, %s90, %s91
      %p95 = pneg %p89
      %p96 = scmp.eq.s32.totalorder %s16, 3
      %p97 = por %p95, %p96
      %p98 = scmp.ne.s32.totalorder %s90, %s93
      %p99 = scmp.eq.s32.totalorder %s16, 0
      %p100 = por %p98, %p99
      %p101 = scmp.ne.s32.totalorder %s90, %s93
      %p102 = scmp.eq.s32.totalorder %s21, 3
      %p103 = por %p101, %p102
      %p104 = scmp.ne.s32.totalorder %s93, %s94
      %p105 = scmp.eq.s32.totalorder %s21, 0
      %p106 = por %p104, %p105
      %p107 = scmp.ne.s32.totalorder %s93, %s94
      %p108 = scmp.eq.s32.totalorder %s22, 3
      %p109 = por %p107, %p108
      %p111 = scmp.ne.s32.totalorder %s94, %s110
      %p112 = scmp.eq.s32.totalorder %s22, 0
      %p113 = por %p111, %p112
      %s114 = ssub.s32 %s23, %s35
      %p115 = scmp.eq.s32.totalorder %s114, 0
      %s117 = sadd.s32 %s116, 1
      %s118 = scalar_select %p115, %s116, %s117
      %p121 = pneg %p115
      %p122 = scmp.eq.s32.totalorder %s16, 3
      %p123 = por %p121, %p122
      %p124 = scmp.ne.s32.totalorder %s116, %s119
      %p125 = scmp.eq.s32.totalorder %s16, 0
      %p126 = por %p124, %p125
      %p127 = scmp.ne.s32.totalorder %s116, %s119
      %p128 = scmp.eq.s32.totalorder %s21, 3
      %p129 = por %p127, %p128
      %p130 = scmp.ne.s32.totalorder %s119, %s120
      %p131 = scmp.eq.s32.totalorder %s21, 0
      %p132 = por %p130, %p131
      %p133 = scmp.ne.s32.totalorder %s119, %s120
      %p134 = scmp.eq.s32.totalorder %s22, 3
      %p135 = por %p133, %p134
      %p137 = scmp.ne.s32.totalorder %s120, %s136
      %p138 = scmp.eq.s32.totalorder %s22, 0
      %p139 = por %p137, %p138
      %p140 = scmp.le.s32.totalorder 1, %s16
      %p141 = scmp.lt.s32.totalorder %s16, 5
      %p142 = pnand %p140, %p141
      %p143 = pneg %p142
      // Predicated region
      $region9: #{_mlp_pallas_jit.1} parent=5 // pred_check
        _
      $region10: #{_mlp_pallas_jit.1} parent=5 // pred_check_branch
        %145 = sbr.rel (%p142) target = $region12
      $region11: #{_mlp_pallas_jit.1} parent=5 // pred_region
        %s146 = ssub.s32 %s16, 1
        // Predicated region
        $region13: #{_mlp_pallas_jit.1} parent=11 // pred_check
          %p147 = pneg %p54
        $region14: #{_mlp_pallas_jit.1} parent=11 // pred_check_branch
          %149 = sbr.rel (%p147) target = $region16
        $region15: #{_mlp_pallas_jit.1} parent=11 // pred_region
          %s150 = smul.u32 4, %s25
          %p151 = scmp.lt.s32.totalorder %s150, 3
          %s152 = scalar_select %p151, %s150, 3
          %s153 = smul.addr %s152, 2
          %s154 = smul.addr %s153, 4
          %s155 = scalar_lea.vmem %s0, %s154
          %s156 = smul.u32 4, %s25
        $region16: #{_mlp_pallas_jit.1} parent=11 // pred_fallthru
          _
      $region12: #{_mlp_pallas_jit.1} parent=5 // pred_fallthru
        _
      %p157 = scmp.lt.s32.totalorder %s16, 4
      // Predicated region
      $region17: #{_mlp_pallas_jit.1} parent=5 // pred_check
        %p158 = pneg %p157
      $region18: #{_mlp_pallas_jit.1} parent=5 // pred_check_branch
        %160 = sbr.rel (%p158) target = $region20
      $region19: #{_mlp_pallas_jit.1} parent=5 // pred_region
        // Predicated region
        $region21: #{_mlp_pallas_jit.1} parent=19 // pred_check
          %p161 = pneg %p74
        $region22: #{_mlp_pallas_jit.1} parent=19 // pred_check_branch
          %163 = sbr.rel (%p161) target = $region24
        $region23: #{_mlp_pallas_jit.1} parent=19 // pred_region
          %s164 = sand.u32 %s64, 1
          %s165 = scalar_lea.sflag [#allocation3], %s164
          %s166 = sand.u32 %s64, 1
          %s167 = smul.addr %s166, 256
          %s168 = scalar_lea.vmem [#allocation2], %s167
          %s170 = ssub.s32 4096, 4096
          %171 = vsyncadd %s165, %s170
          %s172 = smul.addr %s24, 64
          %s173 = smul.addr %s172, 64
          %s174 = scalar_lea.hbm %s1, %s173
          %s175 = sshll.u32 %s168, 4
          %s176 = int_to_ptr.vmem [resolvable:$true] %s175
          %181 = dma.hbm_to_vmem [thread:$0]  %s174, 4096, %s176, %s165, 128, 128, 8
        $region24: #{_mlp_pallas_jit.1} parent=19 // pred_fallthru
          _
        // Predicated region
        $region25: #{_mlp_pallas_jit.1} parent=19 // pred_check
          %p182 = pneg %p100
        $region26: #{_mlp_pallas_jit.1} parent=19 // pred_check_branch
          %184 = sbr.rel (%p182) target = $region28
        $region27: #{_mlp_pallas_jit.1} parent=19 // pred_region
          %s185 = sand.u32 %s90, 1
          %s186 = scalar_lea.sflag [#allocation6], %s185
          %s187 = sand.u32 %s90, 1
          %s188 = smul.addr %s187, 128
          %s189 = scalar_lea.vmem [#allocation5], %s188
          %s191 = ssub.s32 2048, 2048
          %192 = vsyncadd %s186, %s191
          %s193 = smul.addr %s24, 32
          %s194 = smul.addr %s193, 64
          %s195 = scalar_lea.hbm %s2, %s194
          %s196 = sshll.u32 %s189, 4
          %s197 = int_to_ptr.vmem [resolvable:$true] %s196
          %202 = dma.hbm_to_vmem [thread:$0]  %s195, 2048, %s197, %s186, 128, 128, 8
        $region28: #{_mlp_pallas_jit.1} parent=19 // pred_fallthru
          _
      $region20: #{_mlp_pallas_jit.1} parent=5 // pred_fallthru
        _
      %p203 = scmp.le.s32.totalorder 1, %s16
      %p204 = scmp.lt.s32.totalorder %s16, 5
      %p205 = pnand %p203, %p204
      %p206 = pneg %p205
      // Predicated region
      $region29: #{_mlp_pallas_jit.1} parent=5 // pred_check
        _
      $region30: #{_mlp_pallas_jit.1} parent=5 // pred_check_branch
        %208 = sbr.rel (%p205) target = $region32
      $region31: #{_mlp_pallas_jit.1} parent=5 // pred_region
        %s209 = ssub.s32 %s16, 1
        %s210 = sand.u32 %s67, 1
        %s211 = scalar_lea.sflag [#allocation3], %s210
        %s212 = sand.u32 %s67, 1
        %s213 = smul.addr %s212, 256
        %s214 = scalar_lea.vmem [#allocation2], %s213
        // Predicated region
        $region33: #{_mlp_pallas_jit.1} parent=31 // pred_check
          %p215 = pneg %p80
        $region34: #{_mlp_pallas_jit.1} parent=31 // pred_check_branch
          %217 = sbr.rel (%p215) target = $region36
        $region35: #{_mlp_pallas_jit.1} parent=31 // pred_region
          %218 = dma.done %s211, 4096
        $region36: #{_mlp_pallas_jit.1} parent=31 // pred_fallthru
          _
        %s219 = sand.u32 %s93, 1
        %s220 = scalar_lea.sflag [#allocation6], %s219
        %s221 = sand.u32 %s93, 1
        %s222 = smul.addr %s221, 128
        %s223 = scalar_lea.vmem [#allocation5], %s222
        // Predicated region
        $region37: #{_mlp_pallas_jit.1} parent=31 // pred_check
          %p224 = pneg %p106
        $region38: #{_mlp_pallas_jit.1} parent=31 // pred_check_branch
          %226 = sbr.rel (%p224) target = $region40
        $region39: #{_mlp_pallas_jit.1} parent=31 // pred_region
          %227 = dma.done %s220, 2048
        $region40: #{_mlp_pallas_jit.1} parent=31 // pred_fallthru
          _
        %s228 = smul.u32 4, %s25
        %p229 = scmp.lt.s32.totalorder %s228, 3
        %s230 = scalar_select %p229, %s228, 3
        %s231 = smul.addr %s230, 2
        %s232 = smul.addr %s231, 4
        %s233 = scalar_lea.vmem %s0, %s232
        %p234 = pneg %p54
        %p235 = pneg %p51
        %s236 = sand.u32 %s67, 1
        %s237 = scalar_lea.sflag [#allocation3], %s236
        %s238 = sand.u32 %s67, 1
        %s239 = smul.addr %s238, 256
        %s240 = scalar_lea.vmem [#allocation2], %s239
        %p241 = pneg %p80
        %p242 = pneg %p77
        %s243 = sand.u32 %s93, 1
        %s244 = scalar_lea.sflag [#allocation6], %s243
        %s245 = sand.u32 %s93, 1
        %s246 = smul.addr %s245, 128
        %s247 = scalar_lea.vmem [#allocation5], %s246
        %p248 = pneg %p106
        %p249 = pneg %p103
        %p250 = pneg %p132
        %p251 = pneg %p129
        %s252 = smul.u32 4, %s25
        %p253 = scmp.lt.s32.totalorder %s252, 3
        %s254 = scalar_select %p253, %s252, 3
        %s255 = smul.addr %s254, 2
        %s256 = smul.addr %s255, 4
        %s257 = scalar_lea.vmem %s0, %s256
        %s258 = smul.u32 4, %s25
        %s259 = smul.u32 4, %s25
        %p261 = scmp.eq.s32.totalorder %s26, 0
        // Predicated region
        $region41: #{_mlp_pallas_jit.1} parent=31 // pred_check
          %p262 = pneg %p261
        $region42: #{_mlp_pallas_jit.1} parent=31 // pred_check_branch
          %264 = sbr.rel (%p262) target = $region44
        $region43: #{_mlp_pallas_jit.1} parent=31 // pred_region
          %265 = vst [vmem:[#allocation7] sm:$0xff] 0.0
          %266 = vst [vmem:[#allocation7 + $0x8] sm:$0xff] 0.0
          %267 = vst [vmem:[#allocation7 + $0x10] sm:$0xff] 0.0
          %268 = vst [vmem:[#allocation7 + $0x18] sm:$0xff] 0.0
          %269 = vst [vmem:[#allocation7 + $0x20] sm:$0xff] 0.0
          %270 = vst [vmem:[#allocation7 + $0x28] sm:$0xff] 0.0
          %271 = vst [vmem:[#allocation7 + $0x30] sm:$0xff] 0.0
          %272 = vst [vmem:[#allocation7 + $0x38] sm:$0xff] 0.0
        $region44: #{_mlp_pallas_jit.1} parent=31 // pred_fallthru
          _
        %v273 = vld [vmem:[%s257] sm:$0xff]
        %v274 = vld [vmem:[%s257 + $0x8] sm:$0xff]
        %v275 = vld [vmem:[%s257 + $0x10] sm:$0xff]
        %v276 = vld [vmem:[%s257 + $0x18] sm:$0xff]
        %v277 = vld [vmem:[%s214] sm:$0xff]
        %v278 = vld [vmem:[%s214 + $0x8] sm:$0xff]
        %v279 = vld [vmem:[%s214 + $0x10] sm:$0xff]
        %v280 = vld [vmem:[%s214 + $0x18] sm:$0xff]
        %v281 = vld [vmem:[%s214 + $0x20] sm:$0xff]
        %v282 = vld [vmem:[%s214 + $0x28] sm:$0xff]
        %v283 = vld [vmem:[%s214 + $0x30] sm:$0xff]
        %v284 = vld [vmem:[%s214 + $0x38] sm:$0xff]
        %v285 = vld [vmem:[%s214 + $0x40] sm:$0xff]
        %v286 = vld [vmem:[%s214 + $0x48] sm:$0xff]
        %v287 = vld [vmem:[%s214 + $0x50] sm:$0xff]
        %v288 = vld [vmem:[%s214 + $0x58] sm:$0xff]
        %v289 = vld [vmem:[%s214 + $0x60] sm:$0xff]
        %v290 = vld [vmem:[%s214 + $0x68] sm:$0xff]
        %v291 = vld [vmem:[%s214 + $0x70] sm:$0xff]
        %v292 = vld [vmem:[%s214 + $0x78] sm:$0xff]
        %v293 = vld [vmem:[%s214 + $0x80] sm:$0xff]
        %v294 = vld [vmem:[%s214 + $0x88] sm:$0xff]
        %v295 = vld [vmem:[%s214 + $0x90] sm:$0xff]
        %v296 = vld [vmem:[%s214 + $0x98] sm:$0xff]
        %v297 = vld [vmem:[%s214 + $0xa0] sm:$0xff]
        %v298 = vld [vmem:[%s214 + $0xa8] sm:$0xff]
        %v299 = vld [vmem:[%s214 + $0xb0] sm:$0xff]
        %v300 = vld [vmem:[%s214 + $0xb8] sm:$0xff]
        %v301 = vld [vmem:[%s214 + $0xc0] sm:$0xff]
        %v302 = vld [vmem:[%s214 + $0xc8] sm:$0xff]
        %v303 = vld [vmem:[%s214 + $0xd0] sm:$0xff]
        %v304 = vld [vmem:[%s214 + $0xd8] sm:$0xff]
        %v305 = vld [vmem:[%s214 + $0xe0] sm:$0xff]
        %v306 = vld [vmem:[%s214 + $0xe8] sm:$0xff]
        %v307 = vld [vmem:[%s214 + $0xf0] sm:$0xff]
        %v308 = vld [vmem:[%s214 + $0xf8] sm:$0xff]
        %v313 = vunpack.c.l.b16 %v273
        %v314 = vunpack.c.h.b16 %v273
        %v315 = vunpack.c.l.b16 %v274
        %v316 = vunpack.c.h.b16 %v274
        %v317 = vunpack.c.l.b16 %v275
        %v318 = vunpack.c.h.b16 %v275
        %v319 = vunpack.c.l.b16 %v276
        %v320 = vunpack.c.h.b16 %v276
        %v321 = vpack.c.b16 %v315, %v313
        %v322 = vpack.c.b16 %v316, %v314
        %v323 = vpack.c.b16 %v319, %v317
        %v324 = vpack.c.b16 %v320, %v318
        %v361 = vunpack.c.l.b16 %v277
        %v362 = vunpack.c.h.b16 %v277
        %v363 = vunpack.c.l.b16 %v278
        %v364 = vunpack.c.h.b16 %v278
        %v365 = vunpack.c.l.b16 %v279
        %v366 = vunpack.c.h.b16 %v279
        %v367 = vunpack.c.l.b16 %v280
        %v368 = vunpack.c.h.b16 %v280
        %v369 = vunpack.c.l.b16 %v281
        %v370 = vunpack.c.h.b16 %v281
        %v371 = vunpack.c.l.b16 %v282
        %v372 = vunpack.c.h.b16 %v282
        %v373 = vunpack.c.l.b16 %v283
        %v374 = vunpack.c.h.b16 %v283
        %v375 = vunpack.c.l.b16 %v284
        %v376 = vunpack.c.h.b16 %v284
        %v377 = vunpack.c.l.b16 %v285
        %v378 = vunpack.c.h.b16 %v285
        %v379 = vunpack.c.l.b16 %v286
        %v380 = vunpack.c.h.b16 %v286
        %v381 = vunpack.c.l.b16 %v287
        %v382 = vunpack.c.h.b16 %v287
        %v383 = vunpack.c.l.b16 %v288
        %v384 = vunpack.c.h.b16 %v288
        %v385 = vunpack.c.l.b16 %v289
        %v386 = vunpack.c.h.b16 %v289
        %v387 = vunpack.c.l.b16 %v290
        %v388 = vunpack.c.h.b16 %v290
        %v389 = vunpack.c.l.b16 %v291
        %v390 = vunpack.c.h.b16 %v291
        %v391 = vunpack.c.l.b16 %v292
        %v392 = vunpack.c.h.b16 %v292
        %v393 = vunpack.c.l.b16 %v293
        %v394 = vunpack.c.h.b16 %v293
        %v395 = vunpack.c.l.b16 %v294
        %v396 = vunpack.c.h.b16 %v294
        %v397 = vunpack.c.l.b16 %v295
        %v398 = vunpack.c.h.b16 %v295
        %v399 = vunpack.c.l.b16 %v296
        %v400 = vunpack.c.h.b16 %v296
        %v401 = vunpack.c.l.b16 %v297
        %v402 = vunpack.c.h.b16 %v297
        %v403 = vunpack.c.l.b16 %v298
        %v404 = vunpack.c.h.b16 %v298
        %v405 = vunpack.c.l.b16 %v299
        %v406 = vunpack.c.h.b16 %v299
        %v407 = vunpack.c.l.b16 %v300
        %v408 = vunpack.c.h.b16 %v300
        %v409 = vunpack.c.l.b16 %v301
        %v410 = vunpack.c.h.b16 %v301
        %v411 = vunpack.c.l.b16 %v302
        %v412 = vunpack.c.h.b16 %v302
        %v413 = vunpack.c.l.b16 %v303
        %v414 = vunpack.c.h.b16 %v303
        %v415 = vunpack.c.l.b16 %v304
        %v416 = vunpack.c.h.b16 %v304
        %v417 = vunpack.c.l.b16 %v305
        %v418 = vunpack.c.h.b16 %v305
        %v419 = vunpack.c.l.b16 %v306
        %v420 = vunpack.c.h.b16 %v306
        %v421 = vunpack.c.l.b16 %v307
        %v422 = vunpack.c.h.b16 %v307
        %v423 = vunpack.c.l.b16 %v308
        %v424 = vunpack.c.h.b16 %v308
        %v425 = vpack.c.b16 %v363, %v361
        %v426 = vpack.c.b16 %v364, %v362
        %v427 = vpack.c.b16 %v367, %v365
        %v428 = vpack.c.b16 %v368, %v366
        %v429 = vpack.c.b16 %v371, %v369
        %v430 = vpack.c.b16 %v372, %v370
        %v431 = vpack.c.b16 %v375, %v373
        %v432 = vpack.c.b16 %v376, %v374
        %v433 = vpack.c.b16 %v379, %v377
        %v434 = vpack.c.b16 %v380, %v378
        %v435 = vpack.c.b16 %v383, %v381
        %v436 = vpack.c.b16 %v384, %v382
        %v437 = vpack.c.b16 %v387, %v385
        %v438 = vpack.c.b16 %v388, %v386
        %v439 = vpack.c.b16 %v391, %v389
        %v440 = vpack.c.b16 %v392, %v390
        %v441 = vpack.c.b16 %v395, %v393
        %v442 = vpack.c.b16 %v396, %v394
        %v443 = vpack.c.b16 %v399, %v397
        %v444 = vpack.c.b16 %v400, %v398
        %v445 = vpack.c.b16 %v403, %v401
        %v446 = vpack.c.b16 %v404, %v402
        %v447 = vpack.c.b16 %v407, %v405
        %v448 = vpack.c.b16 %v408, %v406
        %v449 = vpack.c.b16 %v411, %v409
        %v450 = vpack.c.b16 %v412, %v410
        %v451 = vpack.c.b16 %v415, %v413
        %v452 = vpack.c.b16 %v416, %v414
        %v453 = vpack.c.b16 %v419, %v417
        %v454 = vpack.c.b16 %v420, %v418
        %v455 = vpack.c.b16 %v423, %v421
        %v456 = vpack.c.b16 %v424, %v422
        %489 = vmatprep.subr.bf16.mxu0 %v426
        %490 = vmatpush1.bf16.msra.mxu0 %v425
        %491 = vmatprep.subr.bf16.mxu0 %v428
        %492 = vmatpush1.bf16.msra.mxu0 %v427
        %493 = vmatprep.subr.bf16.mxu0 %v430
        %494 = vmatpush1.bf16.msra.mxu0 %v429
        %495 = vmatprep.subr.bf16.mxu0 %v432
        %496 = vmatpush1.bf16.msra.mxu0 %v431
        %497 = vmatprep.subr.bf16.mxu0 %v434
        %498 = vmatpush1.bf16.msra.mxu0 %v433
        %499 = vmatprep.subr.bf16.mxu0 %v436
        %500 = vmatpush1.bf16.msra.mxu0 %v435
        %501 = vmatprep.subr.bf16.mxu0 %v438
        %502 = vmatpush1.bf16.msra.mxu0 %v437
        %503 = vmatprep.subr.bf16.mxu0 %v440
        %504 = vmatpush1.bf16.msra.mxu0 %v439
        %505 = vmatprep.subr.bf16.mxu0 %v442
        %506 = vmatpush1.bf16.msra.mxu0 %v441
        %507 = vmatprep.subr.bf16.mxu0 %v444
        %508 = vmatpush1.bf16.msra.mxu0 %v443
        %509 = vmatprep.subr.bf16.mxu0 %v446
        %510 = vmatpush1.bf16.msra.mxu0 %v445
        %511 = vmatprep.subr.bf16.mxu0 %v448
        %512 = vmatpush1.bf16.msra.mxu0 %v447
        %513 = vmatprep.subr.bf16.mxu0 %v450
        %514 = vmatpush1.bf16.msra.mxu0 %v449
        %515 = vmatprep.subr.bf16.mxu0 %v452
        %516 = vmatpush1.bf16.msra.mxu0 %v451
        %517 = vmatprep.subr.bf16.mxu0 %v454
        %518 = vmatpush1.bf16.msra.mxu0 %v453
        %519 = vmatprep.subr.bf16.mxu0 %v456
        %520 = vmatpush1.bf16.msra.mxu0 %v455
        %521 = vmatprep.mubr.bf16.mxu0 %v322
        %522 = vmatmul.mubr.bf16.gmra.mrb[0].mxu0 %v321
        %v523 = vpop.f32.mrb[0].mxu0
        %v524 = vadd.f32 0.0, %v523
        %v525 = vpop.f32.mrb[0].mxu0
        %v526 = vadd.f32 0.0, %v525
        %v527 = vpop.f32.mrb[0].mxu0
        %v528 = vadd.f32 0.0, %v527
        %v529 = vpop.f32.mrb[0].mxu0
        %v530 = vadd.f32 0.0, %v529
        %531 = vmatprep.mubr.bf16.mxu0 %v324
        %532 = vmatmul.mubr.bf16.gmra.mrb[0].mxu0 %v323
        %v533 = vpop.f32.mrb[0].mxu0
        %v534 = vadd.f32 0.0, %v533
        %v535 = vpop.f32.mrb[0].mxu0
        %v536 = vadd.f32 0.0, %v535
        %v537 = vpop.f32.mrb[0].mxu0
        %v538 = vadd.f32 0.0, %v537
        %v539 = vpop.f32.mrb[0].mxu0
        %v540 = vadd.f32 0.0, %v539
        %541 = vdwg.mxu0
        %v542 = vmul.f32 %v524, 0.5
        %v543 = vmul.f32 %v528, 0.5
        %v544 = vmul.f32 %v534, 0.5
        %v545 = vmul.f32 %v538, 0.5
        %v546 = vmul.f32 %v524, 0.70710677
        %v547 = vmul.f32 %v528, 0.70710677
        %v548 = vmul.f32 %v534, 0.70710677
        %v549 = vmul.f32 %v538, 0.70710677
        %v550 = verf.f32.pop %v546
        %v551 = verf.f32.pop %v547
        %v552 = verf.f32.pop %v548
        %v553 = verf.f32.pop %v549
        %v554 = vadd.f32 %v550, 1.0
        %v555 = vadd.f32 %v551, 1.0
        %v556 = vadd.f32 %v552, 1.0
        %v557 = vadd.f32 %v553, 1.0
        %v558 = vmul.f32 %v542, %v554
        %v559 = vmul.f32 %v543, %v555
        %v560 = vmul.f32 %v544, %v556
        %v561 = vmul.f32 %v545, %v557
        %v562 = vmul.f32 %v558, %v526
        %v563 = vmul.f32 %v559, %v530
        %v564 = vmul.f32 %v560, %v536
        %v565 = vmul.f32 %v561, %v540
        %v566 = vpack.c.bf16 %v563, %v562
        %v567 = vpack.c.bf16 %v565, %v564
        %v568 = vld [vmem:[#allocation7] sm:$0xff]
        %v569 = vld [vmem:[#allocation7 + $0x8] sm:$0xff]
        %v570 = vld [vmem:[#allocation7 + $0x10] sm:$0xff]
        %v571 = vld [vmem:[#allocation7 + $0x18] sm:$0xff]
        %v572 = vld [vmem:[#allocation7 + $0x20] sm:$0xff]
        %v573 = vld [vmem:[#allocation7 + $0x28] sm:$0xff]
        %v574 = vld [vmem:[#allocation7 + $0x30] sm:$0xff]
        %v575 = vld [vmem:[#allocation7 + $0x38] sm:$0xff]
        %v576 = vld [vmem:[%s223] sm:$0xff]
        %v577 = vld [vmem:[%s223 + $0x8] sm:$0xff]
        %v578 = vld [vmem:[%s223 + $0x10] sm:$0xff]
        %v579 = vld [vmem:[%s223 + $0x18] sm:$0xff]
        %v580 = vld [vmem:[%s223 + $0x20] sm:$0xff]
        %v581 = vld [vmem:[%s223 + $0x28] sm:$0xff]
        %v582 = vld [vmem:[%s223 + $0x30] sm:$0xff]
        %v583 = vld [vmem:[%s223 + $0x38] sm:$0xff]
        %v584 = vld [vmem:[%s223 + $0x40] sm:$0xff]
        %v585 = vld [vmem:[%s223 + $0x48] sm:$0xff]
        %v586 = vld [vmem:[%s223 + $0x50] sm:$0xff]
        %v587 = vld [vmem:[%s223 + $0x58] sm:$0xff]
        %v588 = vld [vmem:[%s223 + $0x60] sm:$0xff]
        %v589 = vld [vmem:[%s223 + $0x68] sm:$0xff]
        %v590 = vld [vmem:[%s223 + $0x70] sm:$0xff]
        %v591 = vld [vmem:[%s223 + $0x78] sm:$0xff]
        %v608 = vunpack.c.l.b16 %v576
        %v609 = vunpack.c.h.b16 %v576
        %v610 = vunpack.c.l.b16 %v577
        %v611 = vunpack.c.h.b16 %v577
        %v612 = vunpack.c.l.b16 %v578
        %v613 = vunpack.c.h.b16 %v578
        %v614 = vunpack.c.l.b16 %v579
        %v615 = vunpack.c.h.b16 %v579
        %v616 = vunpack.c.l.b16 %v580
        %v617 = vunpack.c.h.b16 %v580
        %v618 = vunpack.c.l.b16 %v581
        %v619 = vunpack.c.h.b16 %v581
        %v620 = vunpack.c.l.b16 %v582
        %v621 = vunpack.c.h.b16 %v582
        %v622 = vunpack.c.l.b16 %v583
        %v623 = vunpack.c.h.b16 %v583
        %v624 = vunpack.c.l.b16 %v584
        %v625 = vunpack.c.h.b16 %v584
        %v626 = vunpack.c.l.b16 %v585
        %v627 = vunpack.c.h.b16 %v585
        %v628 = vunpack.c.l.b16 %v586
        %v629 = vunpack.c.h.b16 %v586
        %v630 = vunpack.c.l.b16 %v587
        %v631 = vunpack.c.h.b16 %v587
        %v632 = vunpack.c.l.b16 %v588
        %v633 = vunpack.c.h.b16 %v588
        %v634 = vunpack.c.l.b16 %v589
        %v635 = vunpack.c.h.b16 %v589
        %v636 = vunpack.c.l.b16 %v590
        %v637 = vunpack.c.h.b16 %v590
        %v638 = vunpack.c.l.b16 %v591
        %v639 = vunpack.c.h.b16 %v591
        %v640 = vpack.c.b16 %v610, %v608
        %v641 = vpack.c.b16 %v611, %v609
        %v642 = vpack.c.b16 %v614, %v612
        %v643 = vpack.c.b16 %v615, %v613
        %v644 = vpack.c.b16 %v618, %v616
        %v645 = vpack.c.b16 %v619, %v617
        %v646 = vpack.c.b16 %v622, %v620
        %v647 = vpack.c.b16 %v623, %v621
        %v648 = vpack.c.b16 %v626, %v624
        %v649 = vpack.c.b16 %v627, %v625
        %v650 = vpack.c.b16 %v630, %v628
        %v651 = vpack.c.b16 %v631, %v629
        %v652 = vpack.c.b16 %v634, %v632
        %v653 = vpack.c.b16 %v635, %v633
        %v654 = vpack.c.b16 %v638, %v636
        %v655 = vpack.c.b16 %v639, %v637
        %672 = vmatprep.subr.bf16.mxu0 %v641
        %673 = vmatpush1.bf16.msra.mxu0 %v640
        %674 = vmatprep.subr.bf16.mxu0 %v643
        %675 = vmatpush1.bf16.msra.mxu0 %v642
        %676 = vmatprep.subr.bf16.mxu0 %v645
        %677 = vmatpush1.bf16.msra.mxu0 %v644
        %678 = vmatprep.subr.bf16.mxu0 %v647
        %679 = vmatpush1.bf16.msra.mxu0 %v646
        %680 = vmatprep.subr.bf16.mxu0 %v649
        %681 = vmatpush1.bf16.msra.mxu0 %v648
        %682 = vmatprep.subr.bf16.mxu0 %v651
        %683 = vmatpush1.bf16.msra.mxu0 %v650
        %684 = vmatprep.subr.bf16.mxu0 %v653
        %685 = vmatpush1.bf16.msra.mxu0 %v652
        %686 = vmatprep.subr.bf16.mxu0 %v655
        %687 = vmatpush1.bf16.msra.mxu0 %v654
        %688 = vmatprep.subr.bf16.mxu0 0
        %689 = vmatpush1.bf16.msra.mxu0 0
        %690 = vmatprep.subr.bf16.mxu0 0
        %691 = vmatpush1.bf16.msra.mxu0 0
        %692 = vmatprep.subr.bf16.mxu0 0
        %693 = vmatpush1.bf16.msra.mxu0 0
        %694 = vmatprep.subr.bf16.mxu0 0
        %695 = vmatpush1.bf16.msra.mxu0 0
        %696 = vmatprep.subr.bf16.mxu0 0
        %697 = vmatpush1.bf16.msra.mxu0 0
        %698 = vmatprep.subr.bf16.mxu0 0
        %699 = vmatpush1.bf16.msra.mxu0 0
        %700 = vmatprep.subr.bf16.mxu0 0
        %701 = vmatpush1.bf16.msra.mxu0 0
        %702 = vmatprep.subr.bf16.mxu0 0
        %703 = vmatpush1.bf16.msra.mxu0 0
        %704 = vmatprep.mubr.bf16.mxu0 0
        %705 = vmatmul.mubr.bf16.gmra.mrb[0].mxu0 %v566
        %v706 = vpop.f32.mrb[0].mxu0
        %v707 = vadd.f32 0.0, %v706
        %v708 = vpop.f32.mrb[0].mxu0
        %v709 = vadd.f32 0.0, %v708
        %v710 = vpop.f32.mrb[0].mxu0
        %v711 = vadd.f32 0.0, %v710
        %v712 = vpop.f32.mrb[0].mxu0
        %v713 = vadd.f32 0.0, %v712
        %714 = vmatprep.mubr.bf16.mxu0 0
        %715 = vmatmul.mubr.bf16.gmra.mrb[0].mxu0 %v567
        %v716 = vpop.f32.mrb[0].mxu0
        %v717 = vadd.f32 0.0, %v716
        %v718 = vpop.f32.mrb[0].mxu0
        %v719 = vadd.f32 0.0, %v718
        %v720 = vpop.f32.mrb[0].mxu0
        %v721 = vadd.f32 0.0, %v720
        %v722 = vpop.f32.mrb[0].mxu0
        %v723 = vadd.f32 0.0, %v722
        %724 = vdwg.mxu0
        %v725 = vadd.f32 %v568, %v707
        %v726 = vadd.f32 %v569, %v709
        %v727 = vadd.f32 %v570, %v711
        %v728 = vadd.f32 %v571, %v713
        %v729 = vadd.f32 %v572, %v717
        %v730 = vadd.f32 %v573, %v719
        %v731 = vadd.f32 %v574, %v721
        %v732 = vadd.f32 %v575, %v723
        %733 = vst [vmem:[#allocation7] sm:$0xff] %v725
        %734 = vst [vmem:[#allocation7 + $0x8] sm:$0xff] %v726
        %735 = vst [vmem:[#allocation7 + $0x10] sm:$0xff] %v727
        %736 = vst [vmem:[#allocation7 + $0x18] sm:$0xff] %v728
        %737 = vst [vmem:[#allocation7 + $0x20] sm:$0xff] %v729
        %738 = vst [vmem:[#allocation7 + $0x28] sm:$0xff] %v730
        %739 = vst [vmem:[#allocation7 + $0x30] sm:$0xff] %v731
        %740 = vst [vmem:[#allocation7 + $0x38] sm:$0xff] %v732
        // Predicated region
        $region45: #{_mlp_pallas_jit.1} parent=31 // pred_check
          %p741 = pneg %p129
        $region46: #{_mlp_pallas_jit.1} parent=31 // pred_check_branch
          %743 = sbr.rel (%p741) target = $region48
        $region47: #{_mlp_pallas_jit.1} parent=31 // pred_region
          %s744 = smul.u32 4, %s25
          %s746 = ssub.s32 1024, 1024
          %747 = vsyncadd [#allocation4], %s746
          %s748 = smul.addr %s744, 2
          %s749 = smul.addr %s748, 128
          %s750 = scalar_lea.hbm %s3, %s749
          %s751 = sshll.u32 [#allocation7], 4
          %s752 = int_to_ptr.vmem [resolvable:$true] %s751
          %757 = dma.vmem_to_hbm [thread:$0]  %s752, 1024, %s750, [#allocation4], 256, 256, 16
        $region48: #{_mlp_pallas_jit.1} parent=31 // pred_fallthru
          _
        // Predicated region
        $region49: #{_mlp_pallas_jit.1} parent=31 // pred_check
          %p758 = pneg %p129
        $region50: #{_mlp_pallas_jit.1} parent=31 // pred_check_branch
          %760 = sbr.rel (%p758) target = $region52
        $region51: #{_mlp_pallas_jit.1} parent=31 // pred_region
          %761 = dma.done [#allocation4], 1024
        $region52: #{_mlp_pallas_jit.1} parent=31 // pred_fallthru
          _
      $region32: #{_mlp_pallas_jit.1} parent=5 // pred_fallthru
        _
      %p762 = scmp.le.s32.totalorder 2, %s16
      // Predicated region
      $region53: #{_mlp_pallas_jit.1} parent=5 // pred_check
        %p763 = pneg %p762
      $region54: #{_mlp_pallas_jit.1} parent=5 // pred_check_branch
        %765 = sbr.rel (%p763) target = $region56
      $region55: #{_mlp_pallas_jit.1} parent=5 // pred_region
        %s766 = ssub.s32 %s16, 2
      $region56: #{_mlp_pallas_jit.1} parent=5 // pred_fallthru
        _
    $region6: #{_mlp_pallas_jit.1} parent=1 // loop_footer
      %s20 = sadd.s32 1, %s16
    $region7: #{_mlp_pallas_jit.1} parent=1 // loop_footer_branch
      %15 = sbr.rel target = $region3
    $region8: #{_mlp_pallas_jit.1} parent=1 // loop_exit
      _
    %767 = vsyncpa [#allocation3], 1
    %s768 = scalar_lea.sflag [#allocation3], 1
    %769 = vsyncpa %s768, 1
    %770 = vsyncpa [#allocation6], 1
    %s771 = scalar_lea.sflag [#allocation6], 1
    %772 = vsyncpa %s771, 1
    %773 = vsyncpa [#allocation4], 1
    %s774 = scalar_lea.sflag [#allocation4], 1
    %775 = vsyncpa %s774, 1

</llo_original>
